<compile_context>
chip_gen: v5e
topology: v5e:2x2
jax: 0.10.0
libtpu: 0.0.40
codegen_flags: <defaults>
</compile_context>

<pallas_src>
import jax
import jax.numpy as jnp
from jax.experimental import pallas as pl
from jax.experimental.pallas import tpu as pltpu

NUM_CLASSES = 16
NUM_MODELS = 3
W3 = NUM_MODELS * NUM_CLASSES      # 48 valid logit columns (3 heads x 16)
W3PAD = 128                        # lane-padded logit width (free in VMEM)


def _make_kernel(tk, w_resident):
    """Grid = (batch tiles, contraction tiles); K is the inner axis."""

    def kernel(x0_ref, x1_ref, x2_ref, w_ref, b_ref, out_ref,
               acc0, acc1, acc2):
        k = pl.program_id(1)

        if w_resident:
            # Whole (D, 128) weight lives in VMEM; slice this step's K chunk.
            off = pl.multiple_of(k * tk, 128)
            w = w_ref[pl.ds(off, tk), :]                     # (TK, 128) bf16
        else:
            w = w_ref[...]                                   # (TK, 128) bf16

        # f32 tiles arrive by DMA; the bf16 cast is VPU work hidden under the
        # DMA and halves MXU input width.  Accumulation stays f32.
        x0 = x0_ref[...].astype(jnp.bfloat16)
        x1 = x1_ref[...].astype(jnp.bfloat16)
        x2 = x2_ref[...].astype(jnp.bfloat16)
        p0 = jnp.dot(x0, w, preferred_element_type=jnp.float32)
        p1 = jnp.dot(x1, w, preferred_element_type=jnp.float32)
        p2 = jnp.dot(x2, w, preferred_element_type=jnp.float32)

        @pl.when(k == 0)
        def _first():                 # direct write: no zero-init pass needed
            acc0[...] = p0
            acc1[...] = p1
            acc2[...] = p2

        @pl.when(k != 0)
        def _accumulate():
            acc0[...] += p0
            acc1[...] += p1
            acc2[...] += p2

        @pl.when(k == pl.num_programs(1) - 1)
        def _finalize():
            tb, wpad = acc0.shape
            bias = b_ref[...]                                 # (1, 128) f32
            # Hoisted class-index iota, shared by all three heads.
            col = jax.lax.broadcasted_iota(jnp.int32, (tb, wpad), 1)

            def head_argmax(acc_ref, head):
                lo = head * NUM_CLASSES
                hi = lo + NUM_CLASSES
                logits = acc_ref[...] + bias                  # (TB, 128) f32
                valid = (col >= lo) & (col < hi)
                masked = jnp.where(valid, logits, -jnp.inf)
                mx = jnp.max(masked, axis=1, keepdims=True)
                # torch.argmax(dim=1): first occurrence wins ties.
                idx = jnp.min(jnp.where((masked == mx) & valid, col, wpad),
                              axis=1, keepdims=True)
                return idx - lo                               # (TB, 1) int32

            c0 = head_argmax(acc0, 0)    # resnet50 predictions
            c1 = head_argmax(acc1, 1)    # resnet152 predictions
            c2 = head_argmax(acc2, 2)    # efficientnetv2 predictions

            # torch.mode(stack([c0, c1, c2]), dim=0) with 3 voters per sample:
            #   - two or three agree -> the agreeing value
            #   - all three distinct -> smallest value (torch tie rule)
            # The module's "if mode_index == 0: mode_outputs[i] = temp[0]"
            # loop is a no-op (mode_index == 0 already implies mode == c0).
            all_min = jnp.minimum(jnp.minimum(c0, c1), c2)
            mode = jnp.where(c1 == c2, c1,
                             jnp.where((c0 == c1) | (c0 == c2), c0, all_min))
            out_ref[...] = mode

    return kernel


def _pick_tile(dim, target, align):
    """Largest multiple of `align` that divides `dim` and is <= `target`.
    Returns `dim` itself when dim <= target (full-dim blocks are always
    legal); returns 0 when dim > target and no aligned divisor exists."""
    if dim <= target:
        return dim
    t = (min(target, dim) // align) * align
    while t >= align:
        if dim % t == 0:
            return t
        t -= align
    return 0


def voting_ensemble(resnet50_input, resnet152_input, efficientnetv2_input,
                    params, *, tb_target=512, tk_target=1024):
    """params: 'w0','w1','w2' [D, NC]; 'b0','b1','b2' [1, NC]."""
    B = resnet50_input.shape[0]
    # Inputs stay f32 (reshape is a view): the bf16 cast happens inside the
    # kernel, so XLA never materializes a separate bf16 activation copy in HBM.
    x0 = resnet50_input.reshape(B, -1)
    x1 = resnet152_input.reshape(B, -1)
    x2 = efficientnetv2_input.reshape(B, -1)
    D = x0.shape[1]

    # One concatenated, lane-padded (48 -> 128) weight/bias: single DMA stream,
    # unmasked accumulator stores.  Padded columns are zero and masked out at
    # argmax time.
    w_all = jnp.concatenate([params["w0"], params["w1"], params["w2"]],
                            axis=1).astype(jnp.bfloat16)
    b_all = jnp.concatenate([params["b0"], params["b1"], params["b2"]],
                            axis=1).astype(jnp.float32)
    w_all = jnp.pad(w_all, ((0, 0), (0, W3PAD - W3)))
    b_all = jnp.pad(b_all, ((0, 0), (0, W3PAD - W3)))

    # --- contraction tile ---------------------------------------------------
    TK = _pick_tile(D, tk_target, 128)
    if TK == 0:
        # Awkward D with no 128-aligned divisor: cap TK (bounds VMEM) and
        # zero-pad the contraction dim once; zero rows/cols contribute exactly
        # 0 to the accumulators.
        TK = (tk_target // 128) * 128
        d_pad = -(-D // TK) * TK
        pad = d_pad - D
        x0 = jnp.pad(x0, ((0, 0), (0, pad)))
        x1 = jnp.pad(x1, ((0, 0), (0, pad)))
        x2 = jnp.pad(x2, ((0, 0), (0, pad)))
        w_all = jnp.pad(w_all, ((0, pad), (0, 0)))
        D = d_pad

    # --- batch tile -----------------------------------------------------------
    tb_goal = tb_target
    if 32 <= B < 2 * tb_target:
        # v7x megacore: make sure the "parallel" batch axis has >= 2 tiles.
        tb_goal = min(tb_target, max(16, ((B + 1) // 2 + 15) // 16 * 16))
    TB = _pick_tile(B, tb_goal, 16)
    if TB == 0:
        # Ragged batch tail is safe: out-of-range rows are never written back.
        TB = tb_goal

    grid = (pl.cdiv(B, TB), D // TK)

    # Keep the whole weight VMEM-resident (fetched once, never re-DMA'd per
    # batch tile) when it is cheap; otherwise stream (TK, 128) tiles.
    w_resident = (2 * D * W3PAD * 2) <= (8 << 20)
    if w_resident:
        w_spec = pl.BlockSpec((D, W3PAD), lambda i, k: (0, 0))
    else:
        w_spec = pl.BlockSpec((TK, W3PAD), lambda i, k: (k, 0))

    x_spec = pl.BlockSpec((TB, TK), lambda i, k: (i, k))
    out = pl.pallas_call(
        _make_kernel(TK, w_resident),
        out_shape=jax.ShapeDtypeStruct((B, 1), jnp.int32),
        grid_spec=pltpu.PrefetchScalarGridSpec(
            num_scalar_prefetch=0,
            grid=grid,
            in_specs=[x_spec, x_spec, x_spec, w_spec,
                      pl.BlockSpec((1, W3PAD), lambda i, k: (0, 0))],
            out_specs=pl.BlockSpec((TB, 1), lambda i, k: (i, 0)),
            scratch_shapes=[pltpu.VMEM((TB, W3PAD), jnp.float32)] * NUM_MODELS),
        compiler_params=pltpu.CompilerParams(
            dimension_semantics=("parallel", "arbitrary"),
            vmem_limit_bytes=48 << 20),
    )(x0, x1, x2, w_all, b_all)
    return out.reshape(B)        # matches torch's [B] vector of class indices


def make_params(key, d, num_classes):
    keys = jax.random.split(key, 6)
    scale = 1.0 / jnp.sqrt(jnp.float32(d))
    return {
        "w0": jax.random.normal(keys[0], (d, num_classes), jnp.float32) * scale,
        "w1": jax.random.normal(keys[1], (d, num_classes), jnp.float32) * scale,
        "w2": jax.random.normal(keys[2], (d, num_classes), jnp.float32) * scale,
        "b0": jax.random.normal(keys[3], (1, num_classes), jnp.float32) * 0.1,
        "b1": jax.random.normal(keys[4], (1, num_classes), jnp.float32) * 0.1,
        "b2": jax.random.normal(keys[5], (1, num_classes), jnp.float32) * 0.1,
    }


if __name__ == "__main__":
    B, C, H, W = 2, 4, 16, 16           # NCHW, small synthetic shapes
    D = C * H * W

    key = jax.random.PRNGKey(0)
    k_in0, k_in1, k_in2, k_par = jax.random.split(key, 4)

    resnet50_input = jax.random.normal(k_in0, (B, C, H, W), jnp.float32)
    resnet152_input = jax.random.normal(k_in1, (B, C, H, W), jnp.float32)
    efficientnetv2_input = jax.random.normal(k_in2, (B, C, H, W), jnp.float32)

    params = make_params(k_par, D, NUM_CLASSES)

    preds = voting_ensemble(resnet50_input, resnet152_input,
                            efficientnetv2_input, params)
    jax.block_until_ready(preds)

    # Pure-JAX reference with the same bf16-multiplicand / f32-accumulate math.
    def ref(x0, x1, x2, p):
        def head(x, w, b):
            xb = x.reshape(x.shape[0], -1).astype(jnp.bfloat16)
            wb = w.astype(jnp.bfloat16)
            logits = jnp.dot(xb, wb, preferred_element_type=jnp.float32) + b
            return jnp.argmax(logits, axis=1).astype(jnp.int32)
        p0 = head(x0, p["w0"], p["b0"])
        p1 = head(x1, p["w1"], p["b1"])
        p2 = head(x2, p["w2"], p["b2"])
        all_min = jnp.minimum(jnp.minimum(p0, p1), p2)
        return jnp.where(p1 == p2, p1,
                         jnp.where((p0 == p1) | (p0 == p2), p0, all_min))

    expected = ref(resnet50_input, resnet152_input, efficientnetv2_input, params)
    assert jnp.array_equal(preds.astype(jnp.int32), expected.astype(jnp.int32))

    print("KERNEL_OK")
</pallas_src>

<mosaic_0001>
module attributes {stable_mosaic.version = 11 : i64} {
  func.func @kernel(%arg0: i32, %arg1: i32, %arg2: memref<2x1024xf32, #tpu.memory_space<vmem>>, %arg3: memref<2x1024xf32, #tpu.memory_space<vmem>>, %arg4: memref<2x1024xf32, #tpu.memory_space<vmem>>, %arg5: memref<1024x128xbf16, #tpu.memory_space<vmem>>, %arg6: memref<1x128xf32, #tpu.memory_space<vmem>>, %arg7: memref<2x1xi32, #tpu.memory_space<vmem>>, %arg8: memref<2x128xf32, #tpu.memory_space<vmem>>, %arg9: memref<2x128xf32, #tpu.memory_space<vmem>>, %arg10: memref<2x128xf32, #tpu.memory_space<vmem>>) attributes {dimension_semantics = [#tpu.dimension_semantics<parallel>, #tpu.dimension_semantics<arbitrary>], iteration_bounds = array<i64: 1, 1>, scalar_prefetch = 0 : i64, scratch_operands = 3 : i64, tpu.core_type = #tpu.core_type<tc>, window_params = [{transform_indices = @transform_0, window_bounds = array<i64: 2, 1024>}, {transform_indices = @transform_1, window_bounds = array<i64: 2, 1024>}, {transform_indices = @transform_2, window_bounds = array<i64: 2, 1024>}, {pipeline_mode = #tpu.pipeline_mode<synchronous>, transform_indices = @transform_3, window_bounds = array<i64: 1024, 128>}, {pipeline_mode = #tpu.pipeline_mode<synchronous>, transform_indices = @transform_4, window_bounds = array<i64: 1, 128>}, {transform_indices = @transform_5, window_bounds = array<i64: 2, 1>}]} {
    %c1024_i32 = arith.constant 1024 : i32
    %0 = arith.muli %arg1, %c1024_i32 : i32
    %1 = tpu.assume_multiple %0, 128 : i32
    %2 = arith.index_cast %1 : i32 to index
    %c0 = arith.constant 0 : index
    %3 = vector.load %arg5[%2, %c0] : memref<1024x128xbf16, #tpu.memory_space<vmem>>, vector<1024x128xbf16>
    %c0_0 = arith.constant 0 : index
    %c0_1 = arith.constant 0 : index
    %4 = vector.load %arg2[%c0_0, %c0_1] : memref<2x1024xf32, #tpu.memory_space<vmem>>, vector<2x1024xf32>
    %5 = arith.truncf %4 : vector<2x1024xf32> to vector<2x1024xbf16>
    %c0_2 = arith.constant 0 : index
    %c0_3 = arith.constant 0 : index
    %6 = vector.load %arg3[%c0_2, %c0_3] : memref<2x1024xf32, #tpu.memory_space<vmem>>, vector<2x1024xf32>
    %7 = arith.truncf %6 : vector<2x1024xf32> to vector<2x1024xbf16>
    %c0_4 = arith.constant 0 : index
    %c0_5 = arith.constant 0 : index
    %8 = vector.load %arg4[%c0_4, %c0_5] : memref<2x1024xf32, #tpu.memory_space<vmem>>, vector<2x1024xf32>
    %9 = arith.truncf %8 : vector<2x1024xf32> to vector<2x1024xbf16>
    %cst = arith.constant dense<0.000000e+00> : vector<2x128xf32>
    %10 = tpu.matmul %5, %3, %cst {dimension_numbers = #tpu.dot_dimension_numbers<[1], [0], [0], [1], [0, 0, 1, 1], [], []>} : vector<2x1024xbf16>, vector<1024x128xbf16>, vector<2x128xf32> -> vector<2x128xf32>
    %cst_6 = arith.constant dense<0.000000e+00> : vector<2x128xf32>
    %11 = tpu.matmul %7, %3, %cst_6 {dimension_numbers = #tpu.dot_dimension_numbers<[1], [0], [0], [1], [0, 0, 1, 1], [], []>} : vector<2x1024xbf16>, vector<1024x128xbf16>, vector<2x128xf32> -> vector<2x128xf32>
    %cst_7 = arith.constant dense<0.000000e+00> : vector<2x128xf32>
    %12 = tpu.matmul %9, %3, %cst_7 {dimension_numbers = #tpu.dot_dimension_numbers<[1], [0], [0], [1], [0, 0, 1, 1], [], []>} : vector<2x1024xbf16>, vector<1024x128xbf16>, vector<2x128xf32> -> vector<2x128xf32>
    %c0_i32 = arith.constant 0 : i32
    %13 = arith.cmpi eq, %arg1, %c0_i32 : i32
    %14 = arith.extui %13 : i1 to i32
    %c0_i32_8 = arith.constant 0 : i32
    %15 = arith.cmpi ne, %14, %c0_i32_8 : i32
    scf.if %15 {
      %c0_13 = arith.constant 0 : index
      %c0_14 = arith.constant 0 : index
      %22 = vector.load %arg8[%c0_13, %c0_14] : memref<2x128xf32, #tpu.memory_space<vmem>>, vector<2x128xf32>
      tpu.vector_store %arg8[%c0_13, %c0_14], %10 {strides = array<i32>} : memref<2x128xf32, #tpu.memory_space<vmem>>, vector<2x128xf32>,
      %c0_15 = arith.constant 0 : index
      %c0_16 = arith.constant 0 : index
      %23 = vector.load %arg9[%c0_15, %c0_16] : memref<2x128xf32, #tpu.memory_space<vmem>>, vector<2x128xf32>
      tpu.vector_store %arg9[%c0_15, %c0_16], %11 {strides = array<i32>} : memref<2x128xf32, #tpu.memory_space<vmem>>, vector<2x128xf32>,
      %c0_17 = arith.constant 0 : index
      %c0_18 = arith.constant 0 : index
      %24 = vector.load %arg10[%c0_17, %c0_18] : memref<2x128xf32, #tpu.memory_space<vmem>>, vector<2x128xf32>
      tpu.vector_store %arg10[%c0_17, %c0_18], %12 {strides = array<i32>} : memref<2x128xf32, #tpu.memory_space<vmem>>, vector<2x128xf32>,
    } else {
    }
    %c0_i32_9 = arith.constant 0 : i32
    %16 = arith.cmpi ne, %arg1, %c0_i32_9 : i32
    %17 = arith.extui %16 : i1 to i32
    %c0_i32_10 = arith.constant 0 : i32
    %18 = arith.cmpi ne, %17, %c0_i32_10 : i32
    scf.if %18 {
      %c0_13 = arith.constant 0 : index
      %c0_14 = arith.constant 0 : index
      %22 = vector.load %arg8[%c0_13, %c0_14] : memref<2x128xf32, #tpu.memory_space<vmem>>, vector<2x128xf32>
      %23 = arith.addf %22, %10 : vector<2x128xf32>
      %c0_15 = arith.constant 0 : index
      %c0_16 = arith.constant 0 : index
      %24 = vector.load %arg8[%c0_15, %c0_16] : memref<2x128xf32, #tpu.memory_space<vmem>>, vector<2x128xf32>
      tpu.vector_store %arg8[%c0_15, %c0_16], %23 {strides = array<i32>} : memref<2x128xf32, #tpu.memory_space<vmem>>, vector<2x128xf32>,
      %c0_17 = arith.constant 0 : index
      %c0_18 = arith.constant 0 : index
      %25 = vector.load %arg9[%c0_17, %c0_18] : memref<2x128xf32, #tpu.memory_space<vmem>>, vector<2x128xf32>
      %26 = arith.addf %25, %11 : vector<2x128xf32>
      %c0_19 = arith.constant 0 : index
      %c0_20 = arith.constant 0 : index
      %27 = vector.load %arg9[%c0_19, %c0_20] : memref<2x128xf32, #tpu.memory_space<vmem>>, vector<2x128xf32>
      tpu.vector_store %arg9[%c0_19, %c0_20], %26 {strides = array<i32>} : memref<2x128xf32, #tpu.memory_space<vmem>>, vector<2x128xf32>,
      %c0_21 = arith.constant 0 : index
      %c0_22 = arith.constant 0 : index
      %28 = vector.load %arg10[%c0_21, %c0_22] : memref<2x128xf32, #tpu.memory_space<vmem>>, vector<2x128xf32>
      %29 = arith.addf %28, %12 : vector<2x128xf32>
      %c0_23 = arith.constant 0 : index
      %c0_24 = arith.constant 0 : index
      %30 = vector.load %arg10[%c0_23, %c0_24] : memref<2x128xf32, #tpu.memory_space<vmem>>, vector<2x128xf32>
      tpu.vector_store %arg10[%c0_23, %c0_24], %29 {strides = array<i32>} : memref<2x128xf32, #tpu.memory_space<vmem>>, vector<2x128xf32>,
    } else {
    }
    %c0_i32_11 = arith.constant 0 : i32
    %19 = arith.cmpi eq, %arg1, %c0_i32_11 : i32
    %20 = arith.extui %19 : i1 to i32
    %c0_i32_12 = arith.constant 0 : i32
    %21 = arith.cmpi ne, %20, %c0_i32_12 : i32
    scf.if %21 {
      %c0_13 = arith.constant 0 : index
      %c0_14 = arith.constant 0 : index
      %22 = vector.load %arg6[%c0_13, %c0_14] : memref<1x128xf32, #tpu.memory_space<vmem>>, vector<1x128xf32>
      %23 = tpu.iota {dimensions = array<i32: 1>} : vector<2x128xi32>
      %c0_15 = arith.constant 0 : index
      %c0_16 = arith.constant 0 : index
      %24 = vector.load %arg8[%c0_15, %c0_16] : memref<2x128xf32, #tpu.memory_space<vmem>>, vector<2x128xf32>
      %25 = vector.broadcast %22 : vector<1x128xf32> to vector<2x128xf32>
      %26 = arith.addf %24, %25 : vector<2x128xf32>
      %c0_i32_17 = arith.constant 0 : i32
      %27 = vector.broadcast %c0_i32_17 : i32 to vector<2x128xi32>
      %28 = arith.cmpi sge, %23, %27 : vector<2x128xi32>
      %c16_i32 = arith.constant 16 : i32
      %29 = vector.broadcast %c16_i32 : i32 to vector<2x128xi32>
      %30 = arith.cmpi slt, %23, %29 : vector<2x128xi32>
      %31 = arith.andi %28, %30 : vector<2x128xi1>
      %cst_18 = arith.constant 0xFF800000 : f32
      %32 = vector.broadcast %cst_18 : f32 to vector<2x128xf32>
      %33 = arith.select %31, %26, %32 : vector<2x128xi1>, vector<2x128xf32>
      %cst_19 = arith.constant dense<0xFF800000> : vector<2xf32>
      %34 = vector.multi_reduction <maximumf>, %33, %cst_19 [1] : vector<2x128xf32> to vector<2xf32>
      %35 = vector.shape_cast %34 : vector<2xf32> to vector<2x1xf32>
      %36 = vector.broadcast %35 : vector<2x1xf32> to vector<2x128xf32>
      %37 = arith.cmpf oeq, %33, %36 : vector<2x128xf32>
      %38 = arith.andi %37, %31 : vector<2x128xi1>
      %c128_i32 = arith.constant 128 : i32
      %39 = vector.broadcast %c128_i32 : i32 to vector<2x128xi32>
      %40 = arith.select %38, %23, %39 : vector<2x128xi1>, vector<2x128xi32>
      %cst_20 = arith.constant dense<2147483647> : vector<2xi32>
      %41 = vector.multi_reduction <minsi>, %40, %cst_20 [1] : vector<2x128xi32> to vector<2xi32>
      %42 = vector.shape_cast %41 : vector<2xi32> to vector<2x1xi32>
      %c0_i32_21 = arith.constant 0 : i32
      %43 = vector.broadcast %c0_i32_21 : i32 to vector<2x1xi32>
      %44 = arith.subi %42, %43 : vector<2x1xi32>
      %c0_22 = arith.constant 0 : index
      %c0_23 = arith.constant 0 : index
      %45 = vector.load %arg9[%c0_22, %c0_23] : memref<2x128xf32, #tpu.memory_space<vmem>>, vector<2x128xf32>
      %46 = vector.broadcast %22 : vector<1x128xf32> to vector<2x128xf32>
      %47 = arith.addf %45, %46 : vector<2x128xf32>
      %c16_i32_24 = arith.constant 16 : i32
      %48 = vector.broadcast %c16_i32_24 : i32 to vector<2x128xi32>
      %49 = arith.cmpi sge, %23, %48 : vector<2x128xi32>
      %c32_i32 = arith.constant 32 : i32
      %50 = vector.broadcast %c32_i32 : i32 to vector<2x128xi32>
      %51 = arith.cmpi slt, %23, %50 : vector<2x128xi32>
      %52 = arith.andi %49, %51 : vector<2x128xi1>
      %cst_25 = arith.constant 0xFF800000 : f32
      %53 = vector.broadcast %cst_25 : f32 to vector<2x128xf32>
      %54 = arith.select %52, %47, %53 : vector<2x128xi1>, vector<2x128xf32>
      %cst_26 = arith.constant dense<0xFF800000> : vector<2xf32>
      %55 = vector.multi_reduction <maximumf>, %54, %cst_26 [1] : vector<2x128xf32> to vector<2xf32>
      %56 = vector.shape_cast %55 : vector<2xf32> to vector<2x1xf32>
      %57 = vector.broadcast %56 : vector<2x1xf32> to vector<2x128xf32>
      %58 = arith.cmpf oeq, %54, %57 : vector<2x128xf32>
      %59 = arith.andi %58, %52 : vector<2x128xi1>
      %c128_i32_27 = arith.constant 128 : i32
      %60 = vector.broadcast %c128_i32_27 : i32 to vector<2x128xi32>
      %61 = arith.select %59, %23, %60 : vector<2x128xi1>, vector<2x128xi32>
      %cst_28 = arith.constant dense<2147483647> : vector<2xi32>
      %62 = vector.multi_reduction <minsi>, %61, %cst_28 [1] : vector<2x128xi32> to vector<2xi32>
      %63 = vector.shape_cast %62 : vector<2xi32> to vector<2x1xi32>
      %c16_i32_29 = arith.constant 16 : i32
      %64 = vector.broadcast %c16_i32_29 : i32 to vector<2x1xi32>
      %65 = arith.subi %63, %64 : vector<2x1xi32>
      %c0_30 = arith.constant 0 : index
      %c0_31 = arith.constant 0 : index
      %66 = vector.load %arg10[%c0_30, %c0_31] : memref<2x128xf32, #tpu.memory_space<vmem>>, vector<2x128xf32>
      %67 = vector.broadcast %22 : vector<1x128xf32> to vector<2x128xf32>
      %68 = arith.addf %66, %67 : vector<2x128xf32>
      %c32_i32_32 = arith.constant 32 : i32
      %69 = vector.broadcast %c32_i32_32 : i32 to vector<2x128xi32>
      %70 = arith.cmpi sge, %23, %69 : vector<2x128xi32>
      %c48_i32 = arith.constant 48 : i32
      %71 = vector.broadcast %c48_i32 : i32 to vector<2x128xi32>
      %72 = arith.cmpi slt, %23, %71 : vector<2x128xi32>
      %73 = arith.andi %70, %72 : vector<2x128xi1>
      %cst_33 = arith.constant 0xFF800000 : f32
      %74 = vector.broadcast %cst_33 : f32 to vector<2x128xf32>
      %75 = arith.select %73, %68, %74 : vector<2x128xi1>, vector<2x128xf32>
      %cst_34 = arith.constant dense<0xFF800000> : vector<2xf32>
      %76 = vector.multi_reduction <maximumf>, %75, %cst_34 [1] : vector<2x128xf32> to vector<2xf32>
      %77 = vector.shape_cast %76 : vector<2xf32> to vector<2x1xf32>
      %78 = vector.broadcast %77 : vector<2x1xf32> to vector<2x128xf32>
      %79 = arith.cmpf oeq, %75, %78 : vector<2x128xf32>
      %80 = arith.andi %79, %73 : vector<2x128xi1>
      %c128_i32_35 = arith.constant 128 : i32
      %81 = vector.broadcast %c128_i32_35 : i32 to vector<2x128xi32>
      %82 = arith.select %80, %23, %81 : vector<2x128xi1>, vector<2x128xi32>
      %cst_36 = arith.constant dense<2147483647> : vector<2xi32>
      %83 = vector.multi_reduction <minsi>, %82, %cst_36 [1] : vector<2x128xi32> to vector<2xi32>
      %84 = vector.shape_cast %83 : vector<2xi32> to vector<2x1xi32>
      %c32_i32_37 = arith.constant 32 : i32
      %85 = vector.broadcast %c32_i32_37 : i32 to vector<2x1xi32>
      %86 = arith.subi %84, %85 : vector<2x1xi32>
      %87 = arith.minsi %44, %65 : vector<2x1xi32>
      %88 = arith.minsi %87, %86 : vector<2x1xi32>
      %89 = arith.cmpi eq, %65, %86 : vector<2x1xi32>
      %90 = arith.cmpi eq, %44, %65 : vector<2x1xi32>
      %91 = arith.cmpi eq, %44, %86 : vector<2x1xi32>
      %92 = arith.ori %90, %91 : vector<2x1xi1>
      %93 = arith.select %92, %44, %88 : vector<2x1xi1>, vector<2x1xi32>
      %94 = arith.select %89, %65, %93 : vector<2x1xi1>, vector<2x1xi32>
      %c0_38 = arith.constant 0 : index
      %c0_39 = arith.constant 0 : index
      %95 = vector.load %arg7[%c0_38, %c0_39] : memref<2x1xi32, #tpu.memory_space<vmem>>, vector<2x1xi32>
      tpu.vector_store %arg7[%c0_38, %c0_39], %94 {strides = array<i32>} : memref<2x1xi32, #tpu.memory_space<vmem>>, vector<2x1xi32>,
    } else {
    }
    return
  }
  func.func @transform_0(%arg0: i32, %arg1: i32) -> (i32, i32) {
    %c0_i32 = arith.constant 0 : i32
    return %arg0, %arg1 : i32, i32
  }
  func.func @transform_1(%arg0: i32, %arg1: i32) -> (i32, i32) {
    %c0_i32 = arith.constant 0 : i32
    return %arg0, %arg1 : i32, i32
  }
  func.func @transform_2(%arg0: i32, %arg1: i32) -> (i32, i32) {
    %c0_i32 = arith.constant 0 : i32
    return %arg0, %arg1 : i32, i32
  }
  func.func @transform_3(%arg0: i32, %arg1: i32) -> (i32, i32) {
    %c0_i32 = arith.constant 0 : i32
    %c0_i32_0 = arith.constant 0 : i32
    %c0_i32_1 = arith.constant 0 : i32
    return %c0_i32, %c0_i32_0 : i32, i32
  }
  func.func @transform_4(%arg0: i32, %arg1: i32) -> (i32, i32) {
    %c0_i32 = arith.constant 0 : i32
    %c0_i32_0 = arith.constant 0 : i32
    %c0_i32_1 = arith.constant 0 : i32
    return %c0_i32, %c0_i32_0 : i32, i32
  }
  func.func @transform_5(%arg0: i32, %arg1: i32) -> (i32, i32) {
    %c0_i32 = arith.constant 0 : i32
    %c0_i32_0 = arith.constant 0 : i32
    return %arg0, %c0_i32 : i32, i32
  }
}

</mosaic_0001>

<llo_original>
// kernel: tpu_custom_call.1
$region0: #{tpu_custom_call.1}
  #allocation0 [shape = 'u32[]', space=smem, size = 0x4, offset = 0x4, fixed_abs, tag = 'smem constant byte address 0x4 - core index']
  #allocation1 [shape = 'u32[72,128]{1,0:T(1,128)}', space=vmem, size = 0x9000, scoped, tag = 'internal scratch']
  #allocation2 [shape = 'f32[2,128]{1,0:T(2,128)}', space=vmem, size = 0x400, scoped, tag = 'scratch operand']
  #allocation3 [shape = 'f32[2,128]{1,0:T(2,128)}', space=vmem, size = 0x400, scoped, tag = 'scratch operand']
  #allocation4 [shape = 'f32[2,128]{1,0:T(2,128)}', space=vmem, size = 0x400, scoped, tag = 'scratch operand']
  %s0 = inlined_call_operand.hbm [shape: f32[2,1024], index: 0, kind: input, shape index: {}]
  %s1 = inlined_call_operand.hbm [shape: f32[2,1024], index: 1, kind: input, shape index: {}]
  %s2 = inlined_call_operand.hbm [shape: f32[2,1024], index: 2, kind: input, shape index: {}]
  %s3 = inlined_call_operand.hbm [shape: bf16[1024,128], index: 3, kind: input, shape index: {}]
  %s4 = inlined_call_operand.vmem [shape: f32[1,128], index: 4, kind: input, shape index: {}]
  %s5 = inlined_call_operand.vmem [shape: s32[2,1], index: 5, kind: output, shape index: {}]
  %s6 = sld [smem:[#allocation0]]
  $region58: #{tpu_custom_call.1} parent=0
    _
  %s8 = ssub.s32 1, %s6
  %s9 = scalar_select 0, %s8, %s6
  $region1: #{tpu_custom_call.1} parent=0
    #allocation5 [shape = 'u8[8192]{0}', space=vmem, size = 0x2000, scoped, tag = 'input window, operand 0, single buffered']
    #allocation6 [shape = 's32[1]{0}', space=sflag, size = 0x4, scoped, tag = 'scoped memory for tpu_custom_call.1']
    #allocation7 [shape = 'u8[8192]{0}', space=vmem, size = 0x2000, scoped, tag = 'input window, operand 1, single buffered']
    #allocation8 [shape = 's32[1]{0}', space=sflag, size = 0x4, scoped, tag = 'scoped memory for tpu_custom_call.1']
    #allocation9 [shape = 'u8[8192]{0}', space=vmem, size = 0x2000, scoped, tag = 'input window, operand 2, single buffered']
    #allocation10 [shape = 'u8[262144]{0}', space=vmem, size = 0x40000, scoped, tag = 'input window, operand 3, single buffered']
    #allocation11 [shape = 's32[1]{0}', space=sflag, size = 0x4, scoped, tag = 'scoped memory for tpu_custom_call.1']
    %10 = vsyncpa [#allocation6], 0
    %11 = vsyncpa [#allocation8], 0
    %12 = vsyncpa [#allocation11], 0
    // Predicated region
    $region2: #{tpu_custom_call.1} parent=1 // pred_check
      _
    $region3: #{tpu_custom_call.1} parent=1 // pred_check_branch
      %14 = sbr.rel (0) target = $region5
    $region4: #{tpu_custom_call.1} parent=1 // pred_region
      %16 = vsyncadd [#allocation6], 0
      %s18 = sshll.u32 %s0, 4
      %s19 = int_to_ptr.hbm [resolvable:$true] %s18
      %s20 = sshll.u32 [#allocation5], 4
      %s21 = int_to_ptr.vmem [resolvable:$true] %s20
      %23 = dma.hbm_to_vmem [thread:$0]  %s19, 256, %s21, [#allocation6]
    $region5: #{tpu_custom_call.1} parent=1 // pred_fallthru
      _
    // Predicated region
    $region6: #{tpu_custom_call.1} parent=1 // pred_check
      _
    $region7: #{tpu_custom_call.1} parent=1 // pred_check_branch
      %25 = sbr.rel (0) target = $region9
    $region8: #{tpu_custom_call.1} parent=1 // pred_region
      %27 = vsyncadd [#allocation8], 0
      %s29 = sshll.u32 %s1, 4
      %s30 = int_to_ptr.hbm [resolvable:$true] %s29
      %s31 = sshll.u32 [#allocation7], 4
      %s32 = int_to_ptr.vmem [resolvable:$true] %s31
      %34 = dma.hbm_to_vmem [thread:$0]  %s30, 256, %s32, [#allocation8]
    $region9: #{tpu_custom_call.1} parent=1 // pred_fallthru
      _
    // Predicated region
    $region10: #{tpu_custom_call.1} parent=1 // pred_check
      _
    $region11: #{tpu_custom_call.1} parent=1 // pred_check_branch
      %36 = sbr.rel (0) target = $region13
    $region12: #{tpu_custom_call.1} parent=1 // pred_region
      %38 = vsyncadd [#allocation8], 0
      %s40 = sshll.u32 %s2, 4
      %s41 = int_to_ptr.hbm [resolvable:$true] %s40
      %s42 = sshll.u32 [#allocation9], 4
      %s43 = int_to_ptr.vmem [resolvable:$true] %s42
      %45 = dma.hbm_to_vmem [thread:$0]  %s41, 256, %s43, [#allocation8]
    $region13: #{tpu_custom_call.1} parent=1 // pred_fallthru
      _
    // Predicated region
    $region14: #{tpu_custom_call.1} parent=1 // pred_check
      _
    $region15: #{tpu_custom_call.1} parent=1 // pred_check_branch
      %47 = sbr.rel (0) target = $region17
    $region16: #{tpu_custom_call.1} parent=1 // pred_region
      %49 = vsyncadd [#allocation11], 0
      %s50 = sshll.u32 %s3, 4
      %s51 = int_to_ptr.hbm [resolvable:$true] %s50
      %s52 = sshll.u32 [#allocation10], 4
      %s53 = int_to_ptr.vmem [resolvable:$true] %s52
      %58 = dma.hbm_to_vmem [thread:$0]  %s51, 8192, %s53, [#allocation11], 64, 64, 4
    $region17: #{tpu_custom_call.1} parent=1 // pred_fallthru
      _
    // Predicated region
    $region18: #{tpu_custom_call.1} parent=1 // pred_check
      _
    $region19: #{tpu_custom_call.1} parent=1 // pred_check_branch
      %60 = sbr.rel (0) target = $region21
    $region20: #{tpu_custom_call.1} parent=1 // pred_region
      _
    $region21: #{tpu_custom_call.1} parent=1 // pred_fallthru
      _
    // Predicated region
    $region22: #{tpu_custom_call.1} parent=1 // pred_check
      _
    $region23: #{tpu_custom_call.1} parent=1 // pred_check_branch
      %62 = sbr.rel (0) target = $region25
    $region24: #{tpu_custom_call.1} parent=1 // pred_region
      %64 = dma.done [#allocation6], 256
    $region25: #{tpu_custom_call.1} parent=1 // pred_fallthru
      _
    // Predicated region
    $region26: #{tpu_custom_call.1} parent=1 // pred_check
      _
    $region27: #{tpu_custom_call.1} parent=1 // pred_check_branch
      %66 = sbr.rel (0) target = $region29
    $region28: #{tpu_custom_call.1} parent=1 // pred_region
      %68 = dma.done [#allocation8], 256
    $region29: #{tpu_custom_call.1} parent=1 // pred_fallthru
      _
    // Predicated region
    $region30: #{tpu_custom_call.1} parent=1 // pred_check
      _
    $region31: #{tpu_custom_call.1} parent=1 // pred_check_branch
      %70 = sbr.rel (0) target = $region33
    $region32: #{tpu_custom_call.1} parent=1 // pred_region
      %72 = dma.done [#allocation8], 256
    $region33: #{tpu_custom_call.1} parent=1 // pred_fallthru
      _
    // Predicated region
    $region34: #{tpu_custom_call.1} parent=1 // pred_check
      _
    $region35: #{tpu_custom_call.1} parent=1 // pred_check_branch
      %74 = sbr.rel (0) target = $region37
    $region36: #{tpu_custom_call.1} parent=1 // pred_region
      %76 = dma.done [#allocation11], 8192
    $region37: #{tpu_custom_call.1} parent=1 // pred_fallthru
      _
    %s77 = smul.u32 0, 1024
    %s78 = sshra.s32 %s77, 3
    %s79 = sand.u32 %s77, 7
    %s80 = smul.addr %s78, 4
    %s81 = scalar_lea.vmem [#allocation10], %s80
    %v82 = vld [vmem:[%s81] sm:$0xf]
    %v83 = vld [vmem:[%s81 + $0x4] sm:$0xf]
    %v84 = vld [vmem:[%s81 + $0x8] sm:$0xf]
    %v85 = vld [vmem:[%s81 + $0xc] sm:$0xf]
    %v86 = vld [vmem:[%s81 + $0x10] sm:$0xf]
    %v87 = vld [vmem:[%s81 + $0x14] sm:$0xf]
    %v88 = vld [vmem:[%s81 + $0x18] sm:$0xf]
    %v89 = vld [vmem:[%s81 + $0x1c] sm:$0xf]
    %v90 = vld [vmem:[%s81 + $0x20] sm:$0xf]
    %v91 = vld [vmem:[%s81 + $0x24] sm:$0xf]
    %v92 = vld [vmem:[%s81 + $0x28] sm:$0xf]
    %v93 = vld [vmem:[%s81 + $0x2c] sm:$0xf]
    %v94 = vld [vmem:[%s81 + $0x30] sm:$0xf]
    %v95 = vld [vmem:[%s81 + $0x34] sm:$0xf]
    %v96 = vld [vmem:[%s81 + $0x38] sm:$0xf]
    %v97 = vld [vmem:[%s81 + $0x3c] sm:$0xf]
    %v98 = vld [vmem:[%s81 + $0x40] sm:$0xf]
    %v99 = vld [vmem:[%s81 + $0x44] sm:$0xf]
    %v100 = vld [vmem:[%s81 + $0x48] sm:$0xf]
    %v101 = vld [vmem:[%s81 + $0x4c] sm:$0xf]
    %v102 = vld [vmem:[%s81 + $0x50] sm:$0xf]
    %v103 = vld [vmem:[%s81 + $0x54] sm:$0xf]
    %v104 = vld [vmem:[%s81 + $0x58] sm:$0xf]
    %v105 = vld [vmem:[%s81 + $0x5c] sm:$0xf]
    %v106 = vld [vmem:[%s81 + $0x60] sm:$0xf]
    %v107 = vld [vmem:[%s81 + $0x64] sm:$0xf]
    %v108 = vld [vmem:[%s81 + $0x68] sm:$0xf]
    %v109 = vld [vmem:[%s81 + $0x6c] sm:$0xf]
    %v110 = vld [vmem:[%s81 + $0x70] sm:$0xf]
    %v111 = vld [vmem:[%s81 + $0x74] sm:$0xf]
    %v112 = vld [vmem:[%s81 + $0x78] sm:$0xf]
    %v113 = vld [vmem:[%s81 + $0x7c] sm:$0xf]
    %v114 = vld [vmem:[%s81 + $0x80] sm:$0xf]
    %v115 = vld [vmem:[%s81 + $0x84] sm:$0xf]
    %v116 = vld [vmem:[%s81 + $0x88] sm:$0xf]
    %v117 = vld [vmem:[%s81 + $0x8c] sm:$0xf]
    %v118 = vld [vmem:[%s81 + $0x90] sm:$0xf]
    %v119 = vld [vmem:[%s81 + $0x94] sm:$0xf]
    %v120 = vld [vmem:[%s81 + $0x98] sm:$0xf]
    %v121 = vld [vmem:[%s81 + $0x9c] sm:$0xf]
    %v122 = vld [vmem:[%s81 + $0xa0] sm:$0xf]
    %v123 = vld [vmem:[%s81 + $0xa4] sm:$0xf]
    %v124 = vld [vmem:[%s81 + $0xa8] sm:$0xf]
    %v125 = vld [vmem:[%s81 + $0xac] sm:$0xf]
    %v126 = vld [vmem:[%s81 + $0xb0] sm:$0xf]
    %v127 = vld [vmem:[%s81 + $0xb4] sm:$0xf]
    %v128 = vld [vmem:[%s81 + $0xb8] sm:$0xf]
    %v129 = vld [vmem:[%s81 + $0xbc] sm:$0xf]
    %v130 = vld [vmem:[%s81 + $0xc0] sm:$0xf]
    %v131 = vld [vmem:[%s81 + $0xc4] sm:$0xf]
    %v132 = vld [vmem:[%s81 + $0xc8] sm:$0xf]
    %v133 = vld [vmem:[%s81 + $0xcc] sm:$0xf]
    %v134 = vld [vmem:[%s81 + $0xd0] sm:$0xf]
    %v135 = vld [vmem:[%s81 + $0xd4] sm:$0xf]
    %v136 = vld [vmem:[%s81 + $0xd8] sm:$0xf]
    %v137 = vld [vmem:[%s81 + $0xdc] sm:$0xf]
    %v138 = vld [vmem:[%s81 + $0xe0] sm:$0xf]
    %v139 = vld [vmem:[%s81 + $0xe4] sm:$0xf]
    %v140 = vld [vmem:[%s81 + $0xe8] sm:$0xf]
    %v141 = vld [vmem:[%s81 + $0xec] sm:$0xf]
    %v142 = vld [vmem:[%s81 + $0xf0] sm:$0xf]
    %v143 = vld [vmem:[%s81 + $0xf4] sm:$0xf]
    %v144 = vld [vmem:[%s81 + $0xf8] sm:$0xf]
    %v145 = vld [vmem:[%s81 + $0xfc] sm:$0xf]
    %v146 = vld [vmem:[%s81 + $0x100] sm:$0xf]
    %v147 = vld [vmem:[%s81 + $0x104] sm:$0xf]
    %v148 = vld [vmem:[%s81 + $0x108] sm:$0xf]
    %v149 = vld [vmem:[%s81 + $0x10c] sm:$0xf]
    %v150 = vld [vmem:[%s81 + $0x110] sm:$0xf]
    %v151 = vld [vmem:[%s81 + $0x114] sm:$0xf]
    %v152 = vld [vmem:[%s81 + $0x118] sm:$0xf]
    %v153 = vld [vmem:[%s81 + $0x11c] sm:$0xf]
    %v154 = vld [vmem:[%s81 + $0x120] sm:$0xf]
    %v155 = vld [vmem:[%s81 + $0x124] sm:$0xf]
    %v156 = vld [vmem:[%s81 + $0x128] sm:$0xf]
    %v157 = vld [vmem:[%s81 + $0x12c] sm:$0xf]
    %v158 = vld [vmem:[%s81 + $0x130] sm:$0xf]
    %v159 = vld [vmem:[%s81 + $0x134] sm:$0xf]
    %v160 = vld [vmem:[%s81 + $0x138] sm:$0xf]
    %v161 = vld [vmem:[%s81 + $0x13c] sm:$0xf]
    %v162 = vld [vmem:[%s81 + $0x140] sm:$0xf]
    %v163 = vld [vmem:[%s81 + $0x144] sm:$0xf]
    %v164 = vld [vmem:[%s81 + $0x148] sm:$0xf]
    %v165 = vld [vmem:[%s81 + $0x14c] sm:$0xf]
    %v166 = vld [vmem:[%s81 + $0x150] sm:$0xf]
    %v167 = vld [vmem:[%s81 + $0x154] sm:$0xf]
    %v168 = vld [vmem:[%s81 + $0x158] sm:$0xf]
    %v169 = vld [vmem:[%s81 + $0x15c] sm:$0xf]
    %v170 = vld [vmem:[%s81 + $0x160] sm:$0xf]
    %v171 = vld [vmem:[%s81 + $0x164] sm:$0xf]
    %v172 = vld [vmem:[%s81 + $0x168] sm:$0xf]
    %v173 = vld [vmem:[%s81 + $0x16c] sm:$0xf]
    %v174 = vld [vmem:[%s81 + $0x170] sm:$0xf]
    %v175 = vld [vmem:[%s81 + $0x174] sm:$0xf]
    %v176 = vld [vmem:[%s81 + $0x178] sm:$0xf]
    %v177 = vld [vmem:[%s81 + $0x17c] sm:$0xf]
    %v178 = vld [vmem:[%s81 + $0x180] sm:$0xf]
    %v179 = vld [vmem:[%s81 + $0x184] sm:$0xf]
    %v180 = vld [vmem:[%s81 + $0x188] sm:$0xf]
    %v181 = vld [vmem:[%s81 + $0x18c] sm:$0xf]
    %v182 = vld [vmem:[%s81 + $0x190] sm:$0xf]
    %v183 = vld [vmem:[%s81 + $0x194] sm:$0xf]
    %v184 = vld [vmem:[%s81 + $0x198] sm:$0xf]
    %v185 = vld [vmem:[%s81 + $0x19c] sm:$0xf]
    %v186 = vld [vmem:[%s81 + $0x1a0] sm:$0xf]
    %v187 = vld [vmem:[%s81 + $0x1a4] sm:$0xf]
    %v188 = vld [vmem:[%s81 + $0x1a8] sm:$0xf]
    %v189 = vld [vmem:[%s81 + $0x1ac] sm:$0xf]
    %v190 = vld [vmem:[%s81 + $0x1b0] sm:$0xf]
    %v191 = vld [vmem:[%s81 + $0x1b4] sm:$0xf]
    %v192 = vld [vmem:[%s81 + $0x1b8] sm:$0xf]
    %v193 = vld [vmem:[%s81 + $0x1bc] sm:$0xf]
    %v194 = vld [vmem:[%s81 + $0x1c0] sm:$0xf]
    %v195 = vld [vmem:[%s81 + $0x1c4] sm:$0xf]
    %v196 = vld [vmem:[%s81 + $0x1c8] sm:$0xf]
    %v197 = vld [vmem:[%s81 + $0x1cc] sm:$0xf]
    %v198 = vld [vmem:[%s81 + $0x1d0] sm:$0xf]
    %v199 = vld [vmem:[%s81 + $0x1d4] sm:$0xf]
    %v200 = vld [vmem:[%s81 + $0x1d8] sm:$0xf]
    %v201 = vld [vmem:[%s81 + $0x1dc] sm:$0xf]
    %v202 = vld [vmem:[%s81 + $0x1e0] sm:$0xf]
    %v203 = vld [vmem:[%s81 + $0x1e4] sm:$0xf]
    %v204 = vld [vmem:[%s81 + $0x1e8] sm:$0xf]
    %v205 = vld [vmem:[%s81 + $0x1ec] sm:$0xf]
    %v206 = vld [vmem:[%s81 + $0x1f0] sm:$0xf]
    %v207 = vld [vmem:[%s81 + $0x1f4] sm:$0xf]
    %v208 = vld [vmem:[%s81 + $0x1f8] sm:$0xf]
    %v209 = vld [vmem:[%s81 + $0x1fc] sm:$0xf]
    %v210 = vld [vmem:[#allocation5] sm:$0xff]
    %v211 = vld [vmem:[#allocation5 + $0x8] sm:$0xff]
    %214 = vst [vmem:[#allocation1] ss:$4 sm:$0xff] %v210
    %s215 = scalar_lea.vmem [#allocation1], 32
    %216 = vst [vmem:[%s215] ss:$4 sm:$0xff] %v211
    %v217 = vld.sshfl [vmem:[#allocation1] sm:$0xff pattern:$0x73625140]
    %v218 = vld.sshfl [vmem:[#allocation1 + $0x8] sm:$0xff pattern:$0x73625140]
    %v219 = vld.sshfl [vmem:[#allocation1 + $0x10] sm:$0xff pattern:$0x73625140]
    %v220 = vld.sshfl [vmem:[#allocation1 + $0x18] sm:$0xff pattern:$0x73625140]
    %v221 = vld.sshfl [vmem:[#allocation1 + $0x20] sm:$0xff pattern:$0x73625140]
    %v222 = vld.sshfl [vmem:[#allocation1 + $0x28] sm:$0xff pattern:$0x73625140]
    %v223 = vld.sshfl [vmem:[#allocation1 + $0x30] sm:$0xff pattern:$0x73625140]
    %v224 = vld.sshfl [vmem:[#allocation1 + $0x38] sm:$0xff pattern:$0x73625140]
    %v233 = vpack.c.bf16 %v217, %v217
    %v234 = vpack.c.bf16 %v218, %v218
    %v235 = vpack.c.bf16 %v219, %v219
    %v236 = vpack.c.bf16 %v220, %v220
    %v237 = vpack.c.bf16 %v221, %v221
    %v238 = vpack.c.bf16 %v222, %v222
    %v239 = vpack.c.bf16 %v223, %v223
    %v240 = vpack.c.bf16 %v224, %v224
    %v241 = vld [vmem:[#allocation7] sm:$0xff]
    %v242 = vld [vmem:[#allocation7 + $0x8] sm:$0xff]
    %245 = vst [vmem:[#allocation1] ss:$4 sm:$0xff] %v241
    %s246 = scalar_lea.vmem [#allocation1], 32
    %247 = vst [vmem:[%s246] ss:$4 sm:$0xff] %v242
    %v248 = vld.sshfl [vmem:[#allocation1] sm:$0xff pattern:$0x73625140]
    %v249 = vld.sshfl [vmem:[#allocation1 + $0x8] sm:$0xff pattern:$0x73625140]
    %v250 = vld.sshfl [vmem:[#allocation1 + $0x10] sm:$0xff pattern:$0x73625140]
    %v251 = vld.sshfl [vmem:[#allocation1 + $0x18] sm:$0xff pattern:$0x73625140]
    %v252 = vld.sshfl [vmem:[#allocation1 + $0x20] sm:$0xff pattern:$0x73625140]
    %v253 = vld.sshfl [vmem:[#allocation1 + $0x28] sm:$0xff pattern:$0x73625140]
    %v254 = vld.sshfl [vmem:[#allocation1 + $0x30] sm:$0xff pattern:$0x73625140]
    %v255 = vld.sshfl [vmem:[#allocation1 + $0x38] sm:$0xff pattern:$0x73625140]
    %v264 = vpack.c.bf16 %v248, %v248
    %v265 = vpack.c.bf16 %v249, %v249
    %v266 = vpack.c.bf16 %v250, %v250
    %v267 = vpack.c.bf16 %v251, %v251
    %v268 = vpack.c.bf16 %v252, %v252
    %v269 = vpack.c.bf16 %v253, %v253
    %v270 = vpack.c.bf16 %v254, %v254
    %v271 = vpack.c.bf16 %v255, %v255
    %v272 = vld [vmem:[#allocation9] sm:$0xff]
    %v273 = vld [vmem:[#allocation9 + $0x8] sm:$0xff]
    %276 = vst [vmem:[#allocation1] ss:$4 sm:$0xff] %v272
    %s277 = scalar_lea.vmem [#allocation1], 32
    %278 = vst [vmem:[%s277] ss:$4 sm:$0xff] %v273
    %v279 = vld.sshfl [vmem:[#allocation1] sm:$0xff pattern:$0x73625140]
    %v280 = vld.sshfl [vmem:[#allocation1 + $0x8] sm:$0xff pattern:$0x73625140]
    %v281 = vld.sshfl [vmem:[#allocation1 + $0x10] sm:$0xff pattern:$0x73625140]
    %v282 = vld.sshfl [vmem:[#allocation1 + $0x18] sm:$0xff pattern:$0x73625140]
    %v283 = vld.sshfl [vmem:[#allocation1 + $0x20] sm:$0xff pattern:$0x73625140]
    %v284 = vld.sshfl [vmem:[#allocation1 + $0x28] sm:$0xff pattern:$0x73625140]
    %v285 = vld.sshfl [vmem:[#allocation1 + $0x30] sm:$0xff pattern:$0x73625140]
    %v286 = vld.sshfl [vmem:[#allocation1 + $0x38] sm:$0xff pattern:$0x73625140]
    %v295 = vpack.c.bf16 %v279, %v279
    %v296 = vpack.c.bf16 %v280, %v280
    %v297 = vpack.c.bf16 %v281, %v281
    %v298 = vpack.c.bf16 %v282, %v282
    %v299 = vpack.c.bf16 %v283, %v283
    %v300 = vpack.c.bf16 %v284, %v284
    %v301 = vpack.c.bf16 %v285, %v285
    %v302 = vpack.c.bf16 %v286, %v286
    %v431 = vunpack.c.l.b16 %v82
    %v432 = vunpack.c.l.b16 %v83
    %v433 = vunpack.c.l.b16 %v84
    %v434 = vunpack.c.l.b16 %v85
    %v435 = vunpack.c.l.b16 %v86
    %v436 = vunpack.c.l.b16 %v87
    %v437 = vunpack.c.l.b16 %v88
    %v438 = vunpack.c.l.b16 %v89
    %v439 = vunpack.c.l.b16 %v90
    %v440 = vunpack.c.l.b16 %v91
    %v441 = vunpack.c.l.b16 %v92
    %v442 = vunpack.c.l.b16 %v93
    %v443 = vunpack.c.l.b16 %v94
    %v444 = vunpack.c.l.b16 %v95
    %v445 = vunpack.c.l.b16 %v96
    %v446 = vunpack.c.l.b16 %v97
    %v447 = vunpack.c.l.b16 %v98
    %v448 = vunpack.c.l.b16 %v99
    %v449 = vunpack.c.l.b16 %v100
    %v450 = vunpack.c.l.b16 %v101
    %v451 = vunpack.c.l.b16 %v102
    %v452 = vunpack.c.l.b16 %v103
    %v453 = vunpack.c.l.b16 %v104
    %v454 = vunpack.c.l.b16 %v105
    %v455 = vunpack.c.l.b16 %v106
    %v456 = vunpack.c.l.b16 %v107
    %v457 = vunpack.c.l.b16 %v108
    %v458 = vunpack.c.l.b16 %v109
    %v459 = vunpack.c.l.b16 %v110
    %v460 = vunpack.c.l.b16 %v111
    %v461 = vunpack.c.l.b16 %v112
    %v462 = vunpack.c.l.b16 %v113
    %v463 = vunpack.c.l.b16 %v114
    %v464 = vunpack.c.l.b16 %v115
    %v465 = vunpack.c.l.b16 %v116
    %v466 = vunpack.c.l.b16 %v117
    %v467 = vunpack.c.l.b16 %v118
    %v468 = vunpack.c.l.b16 %v119
    %v469 = vunpack.c.l.b16 %v120
    %v470 = vunpack.c.l.b16 %v121
    %v471 = vunpack.c.l.b16 %v122
    %v472 = vunpack.c.l.b16 %v123
    %v473 = vunpack.c.l.b16 %v124
    %v474 = vunpack.c.l.b16 %v125
    %v475 = vunpack.c.l.b16 %v126
    %v476 = vunpack.c.l.b16 %v127
    %v477 = vunpack.c.l.b16 %v128
    %v478 = vunpack.c.l.b16 %v129
    %v479 = vunpack.c.l.b16 %v130
    %v480 = vunpack.c.l.b16 %v131
    %v481 = vunpack.c.l.b16 %v132
    %v482 = vunpack.c.l.b16 %v133
    %v483 = vunpack.c.l.b16 %v134
    %v484 = vunpack.c.l.b16 %v135
    %v485 = vunpack.c.l.b16 %v136
    %v486 = vunpack.c.l.b16 %v137
    %v487 = vunpack.c.l.b16 %v138
    %v488 = vunpack.c.l.b16 %v139
    %v489 = vunpack.c.l.b16 %v140
    %v490 = vunpack.c.l.b16 %v141
    %v491 = vunpack.c.l.b16 %v142
    %v492 = vunpack.c.l.b16 %v143
    %v493 = vunpack.c.l.b16 %v144
    %v494 = vunpack.c.l.b16 %v145
    %v495 = vunpack.c.l.b16 %v146
    %v496 = vunpack.c.l.b16 %v147
    %v497 = vunpack.c.l.b16 %v148
    %v498 = vunpack.c.l.b16 %v149
    %v499 = vunpack.c.l.b16 %v150
    %v500 = vunpack.c.l.b16 %v151
    %v501 = vunpack.c.l.b16 %v152
    %v502 = vunpack.c.l.b16 %v153
    %v503 = vunpack.c.l.b16 %v154
    %v504 = vunpack.c.l.b16 %v155
    %v505 = vunpack.c.l.b16 %v156
    %v506 = vunpack.c.l.b16 %v157
    %v507 = vunpack.c.l.b16 %v158
    %v508 = vunpack.c.l.b16 %v159
    %v509 = vunpack.c.l.b16 %v160
    %v510 = vunpack.c.l.b16 %v161
    %v511 = vunpack.c.l.b16 %v162
    %v512 = vunpack.c.l.b16 %v163
    %v513 = vunpack.c.l.b16 %v164
    %v514 = vunpack.c.l.b16 %v165
    %v515 = vunpack.c.l.b16 %v166
    %v516 = vunpack.c.l.b16 %v167
    %v517 = vunpack.c.l.b16 %v168
    %v518 = vunpack.c.l.b16 %v169
    %v519 = vunpack.c.l.b16 %v170
    %v520 = vunpack.c.l.b16 %v171
    %v521 = vunpack.c.l.b16 %v172
    %v522 = vunpack.c.l.b16 %v173
    %v523 = vunpack.c.l.b16 %v174
    %v524 = vunpack.c.l.b16 %v175
    %v525 = vunpack.c.l.b16 %v176
    %v526 = vunpack.c.l.b16 %v177
    %v527 = vunpack.c.l.b16 %v178
    %v528 = vunpack.c.l.b16 %v179
    %v529 = vunpack.c.l.b16 %v180
    %v530 = vunpack.c.l.b16 %v181
    %v531 = vunpack.c.l.b16 %v182
    %v532 = vunpack.c.l.b16 %v183
    %v533 = vunpack.c.l.b16 %v184
    %v534 = vunpack.c.l.b16 %v185
    %v535 = vunpack.c.l.b16 %v186
    %v536 = vunpack.c.l.b16 %v187
    %v537 = vunpack.c.l.b16 %v188
    %v538 = vunpack.c.l.b16 %v189
    %v539 = vunpack.c.l.b16 %v190
    %v540 = vunpack.c.l.b16 %v191
    %v541 = vunpack.c.l.b16 %v192
    %v542 = vunpack.c.l.b16 %v193
    %v543 = vunpack.c.l.b16 %v194
    %v544 = vunpack.c.l.b16 %v195
    %v545 = vunpack.c.l.b16 %v196
    %v546 = vunpack.c.l.b16 %v197
    %v547 = vunpack.c.l.b16 %v198
    %v548 = vunpack.c.l.b16 %v199
    %v549 = vunpack.c.l.b16 %v200
    %v550 = vunpack.c.l.b16 %v201
    %v551 = vunpack.c.l.b16 %v202
    %v552 = vunpack.c.l.b16 %v203
    %v553 = vunpack.c.l.b16 %v204
    %v554 = vunpack.c.l.b16 %v205
    %v555 = vunpack.c.l.b16 %v206
    %v556 = vunpack.c.l.b16 %v207
    %v557 = vunpack.c.l.b16 %v208
    %v558 = vunpack.c.l.b16 %v209
    %v559 = vpack.c.b16 %v432, %v431
    %v560 = vpack.c.b16 %v434, %v433
    %v561 = vpack.c.b16 %v436, %v435
    %v562 = vpack.c.b16 %v438, %v437
    %v563 = vpack.c.b16 %v440, %v439
    %v564 = vpack.c.b16 %v442, %v441
    %v565 = vpack.c.b16 %v444, %v443
    %v566 = vpack.c.b16 %v446, %v445
    %v567 = vpack.c.b16 %v448, %v447
    %v568 = vpack.c.b16 %v450, %v449
    %v569 = vpack.c.b16 %v452, %v451
    %v570 = vpack.c.b16 %v454, %v453
    %v571 = vpack.c.b16 %v456, %v455
    %v572 = vpack.c.b16 %v458, %v457
    %v573 = vpack.c.b16 %v460, %v459
    %v574 = vpack.c.b16 %v462, %v461
    %v575 = vpack.c.b16 %v464, %v463
    %v576 = vpack.c.b16 %v466, %v465
    %v577 = vpack.c.b16 %v468, %v467
    %v578 = vpack.c.b16 %v470, %v469
    %v579 = vpack.c.b16 %v472, %v471
    %v580 = vpack.c.b16 %v474, %v473
    %v581 = vpack.c.b16 %v476, %v475
    %v582 = vpack.c.b16 %v478, %v477
    %v583 = vpack.c.b16 %v480, %v479
    %v584 = vpack.c.b16 %v482, %v481
    %v585 = vpack.c.b16 %v484, %v483
    %v586 = vpack.c.b16 %v486, %v485
    %v587 = vpack.c.b16 %v488, %v487
    %v588 = vpack.c.b16 %v490, %v489
    %v589 = vpack.c.b16 %v492, %v491
    %v590 = vpack.c.b16 %v494, %v493
    %v591 = vpack.c.b16 %v496, %v495
    %v592 = vpack.c.b16 %v498, %v497
    %v593 = vpack.c.b16 %v500, %v499
    %v594 = vpack.c.b16 %v502, %v501
    %v595 = vpack.c.b16 %v504, %v503
    %v596 = vpack.c.b16 %v506, %v505
    %v597 = vpack.c.b16 %v508, %v507
    %v598 = vpack.c.b16 %v510, %v509
    %v599 = vpack.c.b16 %v512, %v511
    %v600 = vpack.c.b16 %v514, %v513
    %v601 = vpack.c.b16 %v516, %v515
    %v602 = vpack.c.b16 %v518, %v517
    %v603 = vpack.c.b16 %v520, %v519
    %v604 = vpack.c.b16 %v522, %v521
    %v605 = vpack.c.b16 %v524, %v523
    %v606 = vpack.c.b16 %v526, %v525
    %v607 = vpack.c.b16 %v528, %v527
    %v608 = vpack.c.b16 %v530, %v529
    %v609 = vpack.c.b16 %v532, %v531
    %v610 = vpack.c.b16 %v534, %v533
    %v611 = vpack.c.b16 %v536, %v535
    %v612 = vpack.c.b16 %v538, %v537
    %v613 = vpack.c.b16 %v540, %v539
    %v614 = vpack.c.b16 %v542, %v541
    %v615 = vpack.c.b16 %v544, %v543
    %v616 = vpack.c.b16 %v546, %v545
    %v617 = vpack.c.b16 %v548, %v547
    %v618 = vpack.c.b16 %v550, %v549
    %v619 = vpack.c.b16 %v552, %v551
    %v620 = vpack.c.b16 %v554, %v553
    %v621 = vpack.c.b16 %v556, %v555
    %v622 = vpack.c.b16 %v558, %v557
    %687 = vmatpush.bf16.msra.mxu0 %v566
    %688 = vmatpush.bf16.msra.mxu0 %v565
    %689 = vmatpush.bf16.msra.mxu0 %v564
    %690 = vmatpush.bf16.msra.mxu0 %v563
    %691 = vmatpush.bf16.msra.mxu0 %v562
    %692 = vmatpush.bf16.msra.mxu0 %v561
    %693 = vmatpush.bf16.msra.mxu0 %v560
    %694 = vmatpush.bf16.msra.mxu0 %v559
    %695 = vmatmul.bf16.gmra.mxu0 %v233
    %v696 = vpop.f32.mrf.mxu0
    %v697 = vadd.f32 0.0, %v696
    %v698 = vpop.f32.mrf.mxu0
    %699 = vdwg.mxu0
    %700 = vmatpush.bf16.msra.mxu0 %v574
    %701 = vmatpush.bf16.msra.mxu0 %v573
    %702 = vmatpush.bf16.msra.mxu0 %v572
    %703 = vmatpush.bf16.msra.mxu0 %v571
    %704 = vmatpush.bf16.msra.mxu0 %v570
    %705 = vmatpush.bf16.msra.mxu0 %v569
    %706 = vmatpush.bf16.msra.mxu0 %v568
    %707 = vmatpush.bf16.msra.mxu0 %v567
    %708 = vmatmul.bf16.gmra.mxu0 %v234
    %v709 = vpop.f32.mrf.mxu0
    %v710 = vadd.f32 %v697, %v709
    %v711 = vpop.f32.mrf.mxu0
    %712 = vdwg.mxu0
    %713 = vmatpush.bf16.msra.mxu0 %v582
    %714 = vmatpush.bf16.msra.mxu0 %v581
    %715 = vmatpush.bf16.msra.mxu0 %v580
    %716 = vmatpush.bf16.msra.mxu0 %v579
    %717 = vmatpush.bf16.msra.mxu0 %v578
    %718 = vmatpush.bf16.msra.mxu0 %v577
    %719 = vmatpush.bf16.msra.mxu0 %v576
    %720 = vmatpush.bf16.msra.mxu0 %v575
    %721 = vmatmul.bf16.gmra.mxu0 %v235
    %v722 = vpop.f32.mrf.mxu0
    %v723 = vadd.f32 %v710, %v722
    %v724 = vpop.f32.mrf.mxu0
    %725 = vdwg.mxu0
    %726 = vmatpush.bf16.msra.mxu0 %v590
    %727 = vmatpush.bf16.msra.mxu0 %v589
    %728 = vmatpush.bf16.msra.mxu0 %v588
    %729 = vmatpush.bf16.msra.mxu0 %v587
    %730 = vmatpush.bf16.msra.mxu0 %v586
    %731 = vmatpush.bf16.msra.mxu0 %v585
    %732 = vmatpush.bf16.msra.mxu0 %v584
    %733 = vmatpush.bf16.msra.mxu0 %v583
    %734 = vmatmul.bf16.gmra.mxu0 %v236
    %v735 = vpop.f32.mrf.mxu0
    %v736 = vadd.f32 %v723, %v735
    %v737 = vpop.f32.mrf.mxu0
    %738 = vdwg.mxu0
    %739 = vmatpush.bf16.msra.mxu0 %v598
    %740 = vmatpush.bf16.msra.mxu0 %v597
    %741 = vmatpush.bf16.msra.mxu0 %v596
    %742 = vmatpush.bf16.msra.mxu0 %v595
    %743 = vmatpush.bf16.msra.mxu0 %v594
    %744 = vmatpush.bf16.msra.mxu0 %v593
    %745 = vmatpush.bf16.msra.mxu0 %v592
    %746 = vmatpush.bf16.msra.mxu0 %v591
    %747 = vmatmul.bf16.gmra.mxu0 %v237
    %v748 = vpop.f32.mrf.mxu0
    %v749 = vadd.f32 %v736, %v748
    %v750 = vpop.f32.mrf.mxu0
    %751 = vdwg.mxu0
    %752 = vmatpush.bf16.msra.mxu0 %v606
    %753 = vmatpush.bf16.msra.mxu0 %v605
    %754 = vmatpush.bf16.msra.mxu0 %v604
    %755 = vmatpush.bf16.msra.mxu0 %v603
    %756 = vmatpush.bf16.msra.mxu0 %v602
    %757 = vmatpush.bf16.msra.mxu0 %v601
    %758 = vmatpush.bf16.msra.mxu0 %v600
    %759 = vmatpush.bf16.msra.mxu0 %v599
    %760 = vmatmul.bf16.gmra.mxu0 %v238
    %v761 = vpop.f32.mrf.mxu0
    %v762 = vadd.f32 %v749, %v761
    %v763 = vpop.f32.mrf.mxu0
    %764 = vdwg.mxu0
    %765 = vmatpush.bf16.msra.mxu0 %v614
    %766 = vmatpush.bf16.msra.mxu0 %v613
    %767 = vmatpush.bf16.msra.mxu0 %v612
    %768 = vmatpush.bf16.msra.mxu0 %v611
    %769 = vmatpush.bf16.msra.mxu0 %v610
    %770 = vmatpush.bf16.msra.mxu0 %v609
    %771 = vmatpush.bf16.msra.mxu0 %v608
    %772 = vmatpush.bf16.msra.mxu0 %v607
    %773 = vmatmul.bf16.gmra.mxu0 %v239
    %v774 = vpop.f32.mrf.mxu0
    %v775 = vadd.f32 %v762, %v774
    %v776 = vpop.f32.mrf.mxu0
    %777 = vdwg.mxu0
    %778 = vmatpush.bf16.msra.mxu0 %v622
    %779 = vmatpush.bf16.msra.mxu0 %v621
    %780 = vmatpush.bf16.msra.mxu0 %v620
    %781 = vmatpush.bf16.msra.mxu0 %v619
    %782 = vmatpush.bf16.msra.mxu0 %v618
    %783 = vmatpush.bf16.msra.mxu0 %v617
    %784 = vmatpush.bf16.msra.mxu0 %v616
    %785 = vmatpush.bf16.msra.mxu0 %v615
    %786 = vmatmul.bf16.gmra.mxu0 %v240
    %v787 = vpop.f32.mrf.mxu0
    %v788 = vadd.f32 %v775, %v787
    %v789 = vpop.f32.mrf.mxu0
    %790 = vdwg.mxu0
    %791 = vmatpush.bf16.msra.mxu0 %v566
    %792 = vmatpush.bf16.msra.mxu0 %v565
    %793 = vmatpush.bf16.msra.mxu0 %v564
    %794 = vmatpush.bf16.msra.mxu0 %v563
    %795 = vmatpush.bf16.msra.mxu0 %v562
    %796 = vmatpush.bf16.msra.mxu0 %v561
    %797 = vmatpush.bf16.msra.mxu0 %v560
    %798 = vmatpush.bf16.msra.mxu0 %v559
    %799 = vmatmul.bf16.gmra.mxu0 %v264
    %v800 = vpop.f32.mrf.mxu0
    %v801 = vadd.f32 0.0, %v800
    %v802 = vpop.f32.mrf.mxu0
    %803 = vdwg.mxu0
    %804 = vmatpush.bf16.msra.mxu0 %v574
    %805 = vmatpush.bf16.msra.mxu0 %v573
    %806 = vmatpush.bf16.msra.mxu0 %v572
    %807 = vmatpush.bf16.msra.mxu0 %v571
    %808 = vmatpush.bf16.msra.mxu0 %v570
    %809 = vmatpush.bf16.msra.mxu0 %v569
    %810 = vmatpush.bf16.msra.mxu0 %v568
    %811 = vmatpush.bf16.msra.mxu0 %v567
    %812 = vmatmul.bf16.gmra.mxu0 %v265
    %v813 = vpop.f32.mrf.mxu0
    %v814 = vadd.f32 %v801, %v813
    %v815 = vpop.f32.mrf.mxu0
    %816 = vdwg.mxu0
    %817 = vmatpush.bf16.msra.mxu0 %v582
    %818 = vmatpush.bf16.msra.mxu0 %v581
    %819 = vmatpush.bf16.msra.mxu0 %v580
    %820 = vmatpush.bf16.msra.mxu0 %v579
    %821 = vmatpush.bf16.msra.mxu0 %v578
    %822 = vmatpush.bf16.msra.mxu0 %v577
    %823 = vmatpush.bf16.msra.mxu0 %v576
    %824 = vmatpush.bf16.msra.mxu0 %v575
    %825 = vmatmul.bf16.gmra.mxu0 %v266
    %v826 = vpop.f32.mrf.mxu0
    %v827 = vadd.f32 %v814, %v826
    %v828 = vpop.f32.mrf.mxu0
    %829 = vdwg.mxu0
    %830 = vmatpush.bf16.msra.mxu0 %v590
    %831 = vmatpush.bf16.msra.mxu0 %v589
    %832 = vmatpush.bf16.msra.mxu0 %v588
    %833 = vmatpush.bf16.msra.mxu0 %v587
    %834 = vmatpush.bf16.msra.mxu0 %v586
    %835 = vmatpush.bf16.msra.mxu0 %v585
    %836 = vmatpush.bf16.msra.mxu0 %v584
    %837 = vmatpush.bf16.msra.mxu0 %v583
    %838 = vmatmul.bf16.gmra.mxu0 %v267
    %v839 = vpop.f32.mrf.mxu0
    %v840 = vadd.f32 %v827, %v839
    %v841 = vpop.f32.mrf.mxu0
    %842 = vdwg.mxu0
    %843 = vmatpush.bf16.msra.mxu0 %v598
    %844 = vmatpush.bf16.msra.mxu0 %v597
    %845 = vmatpush.bf16.msra.mxu0 %v596
    %846 = vmatpush.bf16.msra.mxu0 %v595
    %847 = vmatpush.bf16.msra.mxu0 %v594
    %848 = vmatpush.bf16.msra.mxu0 %v593
    %849 = vmatpush.bf16.msra.mxu0 %v592
    %850 = vmatpush.bf16.msra.mxu0 %v591
    %851 = vmatmul.bf16.gmra.mxu0 %v268
    %v852 = vpop.f32.mrf.mxu0
    %v853 = vadd.f32 %v840, %v852
    %v854 = vpop.f32.mrf.mxu0
    %855 = vdwg.mxu0
    %856 = vmatpush.bf16.msra.mxu0 %v606
    %857 = vmatpush.bf16.msra.mxu0 %v605
    %858 = vmatpush.bf16.msra.mxu0 %v604
    %859 = vmatpush.bf16.msra.mxu0 %v603
    %860 = vmatpush.bf16.msra.mxu0 %v602
    %861 = vmatpush.bf16.msra.mxu0 %v601
    %862 = vmatpush.bf16.msra.mxu0 %v600
    %863 = vmatpush.bf16.msra.mxu0 %v599
    %864 = vmatmul.bf16.gmra.mxu0 %v269
    %v865 = vpop.f32.mrf.mxu0
    %v866 = vadd.f32 %v853, %v865
    %v867 = vpop.f32.mrf.mxu0
    %868 = vdwg.mxu0
    %869 = vmatpush.bf16.msra.mxu0 %v614
    %870 = vmatpush.bf16.msra.mxu0 %v613
    %871 = vmatpush.bf16.msra.mxu0 %v612
    %872 = vmatpush.bf16.msra.mxu0 %v611
    %873 = vmatpush.bf16.msra.mxu0 %v610
    %874 = vmatpush.bf16.msra.mxu0 %v609
    %875 = vmatpush.bf16.msra.mxu0 %v608
    %876 = vmatpush.bf16.msra.mxu0 %v607
    %877 = vmatmul.bf16.gmra.mxu0 %v270
    %v878 = vpop.f32.mrf.mxu0
    %v879 = vadd.f32 %v866, %v878
    %v880 = vpop.f32.mrf.mxu0
    %881 = vdwg.mxu0
    %882 = vmatpush.bf16.msra.mxu0 %v622
    %883 = vmatpush.bf16.msra.mxu0 %v621
    %884 = vmatpush.bf16.msra.mxu0 %v620
    %885 = vmatpush.bf16.msra.mxu0 %v619
    %886 = vmatpush.bf16.msra.mxu0 %v618
    %887 = vmatpush.bf16.msra.mxu0 %v617
    %888 = vmatpush.bf16.msra.mxu0 %v616
    %889 = vmatpush.bf16.msra.mxu0 %v615
    %890 = vmatmul.bf16.gmra.mxu0 %v271
    %v891 = vpop.f32.mrf.mxu0
    %v892 = vadd.f32 %v879, %v891
    %v893 = vpop.f32.mrf.mxu0
    %894 = vdwg.mxu0
    %895 = vmatpush.bf16.msra.mxu0 %v566
    %896 = vmatpush.bf16.msra.mxu0 %v565
    %897 = vmatpush.bf16.msra.mxu0 %v564
    %898 = vmatpush.bf16.msra.mxu0 %v563
    %899 = vmatpush.bf16.msra.mxu0 %v562
    %900 = vmatpush.bf16.msra.mxu0 %v561
    %901 = vmatpush.bf16.msra.mxu0 %v560
    %902 = vmatpush.bf16.msra.mxu0 %v559
    %903 = vmatmul.bf16.gmra.mxu0 %v295
    %v904 = vpop.f32.mrf.mxu0
    %v905 = vadd.f32 0.0, %v904
    %v906 = vpop.f32.mrf.mxu0
    %907 = vdwg.mxu0
    %908 = vmatpush.bf16.msra.mxu0 %v574
    %909 = vmatpush.bf16.msra.mxu0 %v573
    %910 = vmatpush.bf16.msra.mxu0 %v572
    %911 = vmatpush.bf16.msra.mxu0 %v571
    %912 = vmatpush.bf16.msra.mxu0 %v570
    %913 = vmatpush.bf16.msra.mxu0 %v569
    %914 = vmatpush.bf16.msra.mxu0 %v568
    %915 = vmatpush.bf16.msra.mxu0 %v567
    %916 = vmatmul.bf16.gmra.mxu0 %v296
    %v917 = vpop.f32.mrf.mxu0
    %v918 = vadd.f32 %v905, %v917
    %v919 = vpop.f32.mrf.mxu0
    %920 = vdwg.mxu0
    %921 = vmatpush.bf16.msra.mxu0 %v582
    %922 = vmatpush.bf16.msra.mxu0 %v581
    %923 = vmatpush.bf16.msra.mxu0 %v580
    %924 = vmatpush.bf16.msra.mxu0 %v579
    %925 = vmatpush.bf16.msra.mxu0 %v578
    %926 = vmatpush.bf16.msra.mxu0 %v577
    %927 = vmatpush.bf16.msra.mxu0 %v576
    %928 = vmatpush.bf16.msra.mxu0 %v575
    %929 = vmatmul.bf16.gmra.mxu0 %v297
    %v930 = vpop.f32.mrf.mxu0
    %v931 = vadd.f32 %v918, %v930
    %v932 = vpop.f32.mrf.mxu0
    %933 = vdwg.mxu0
    %934 = vmatpush.bf16.msra.mxu0 %v590
    %935 = vmatpush.bf16.msra.mxu0 %v589
    %936 = vmatpush.bf16.msra.mxu0 %v588
    %937 = vmatpush.bf16.msra.mxu0 %v587
    %938 = vmatpush.bf16.msra.mxu0 %v586
    %939 = vmatpush.bf16.msra.mxu0 %v585
    %940 = vmatpush.bf16.msra.mxu0 %v584
    %941 = vmatpush.bf16.msra.mxu0 %v583
    %942 = vmatmul.bf16.gmra.mxu0 %v298
    %v943 = vpop.f32.mrf.mxu0
    %v944 = vadd.f32 %v931, %v943
    %v945 = vpop.f32.mrf.mxu0
    %946 = vdwg.mxu0
    %947 = vmatpush.bf16.msra.mxu0 %v598
    %948 = vmatpush.bf16.msra.mxu0 %v597
    %949 = vmatpush.bf16.msra.mxu0 %v596
    %950 = vmatpush.bf16.msra.mxu0 %v595
    %951 = vmatpush.bf16.msra.mxu0 %v594
    %952 = vmatpush.bf16.msra.mxu0 %v593
    %953 = vmatpush.bf16.msra.mxu0 %v592
    %954 = vmatpush.bf16.msra.mxu0 %v591
    %955 = vmatmul.bf16.gmra.mxu0 %v299
    %v956 = vpop.f32.mrf.mxu0
    %v957 = vadd.f32 %v944, %v956
    %v958 = vpop.f32.mrf.mxu0
    %959 = vdwg.mxu0
    %960 = vmatpush.bf16.msra.mxu0 %v606
    %961 = vmatpush.bf16.msra.mxu0 %v605
    %962 = vmatpush.bf16.msra.mxu0 %v604
    %963 = vmatpush.bf16.msra.mxu0 %v603
    %964 = vmatpush.bf16.msra.mxu0 %v602
    %965 = vmatpush.bf16.msra.mxu0 %v601
    %966 = vmatpush.bf16.msra.mxu0 %v600
    %967 = vmatpush.bf16.msra.mxu0 %v599
    %968 = vmatmul.bf16.gmra.mxu0 %v300
    %v969 = vpop.f32.mrf.mxu0
    %v970 = vadd.f32 %v957, %v969
    %v971 = vpop.f32.mrf.mxu0
    %972 = vdwg.mxu0
    %973 = vmatpush.bf16.msra.mxu0 %v614
    %974 = vmatpush.bf16.msra.mxu0 %v613
    %975 = vmatpush.bf16.msra.mxu0 %v612
    %976 = vmatpush.bf16.msra.mxu0 %v611
    %977 = vmatpush.bf16.msra.mxu0 %v610
    %978 = vmatpush.bf16.msra.mxu0 %v609
    %979 = vmatpush.bf16.msra.mxu0 %v608
    %980 = vmatpush.bf16.msra.mxu0 %v607
    %981 = vmatmul.bf16.gmra.mxu0 %v301
    %v982 = vpop.f32.mrf.mxu0
    %v983 = vadd.f32 %v970, %v982
    %v984 = vpop.f32.mrf.mxu0
    %985 = vdwg.mxu0
    %986 = vmatpush.bf16.msra.mxu0 %v622
    %987 = vmatpush.bf16.msra.mxu0 %v621
    %988 = vmatpush.bf16.msra.mxu0 %v620
    %989 = vmatpush.bf16.msra.mxu0 %v619
    %990 = vmatpush.bf16.msra.mxu0 %v618
    %991 = vmatpush.bf16.msra.mxu0 %v617
    %992 = vmatpush.bf16.msra.mxu0 %v616
    %993 = vmatpush.bf16.msra.mxu0 %v615
    %994 = vmatmul.bf16.gmra.mxu0 %v302
    %v995 = vpop.f32.mrf.mxu0
    %v996 = vadd.f32 %v983, %v995
    %v997 = vpop.f32.mrf.mxu0
    %998 = vdwg.mxu0
    %p999 = scmp.eq.s32.totalorder 0, 0
    // Predicated region
    $region38: #{tpu_custom_call.1} parent=1 // pred_check
      %p1000 = pneg %p999
    $region39: #{tpu_custom_call.1} parent=1 // pred_check_branch
      %1002 = sbr.rel (%p1000) target = $region41
    $region40: #{tpu_custom_call.1} parent=1 // pred_region
      %1003 = vst [vmem:[#allocation2] sm:$0x3] %v788
      %1004 = vst [vmem:[#allocation3] sm:$0x3] %v892
      %1005 = vst [vmem:[#allocation4] sm:$0x3] %v996
    $region41: #{tpu_custom_call.1} parent=1 // pred_fallthru
      _
    %p1006 = scmp.ne.s32.totalorder 0, 0
    // Predicated region
    $region42: #{tpu_custom_call.1} parent=1 // pred_check
      %p1007 = pneg %p1006
    $region43: #{tpu_custom_call.1} parent=1 // pred_check_branch
      %1009 = sbr.rel (%p1007) target = $region45
    $region44: #{tpu_custom_call.1} parent=1 // pred_region
      %v1010 = vld [vmem:[#allocation2] sm:$0x3]
      %v1011 = vadd.f32 %v1010, %v788
      %1012 = vst [vmem:[#allocation2] sm:$0x3] %v1011
      %v1013 = vld [vmem:[#allocation3] sm:$0x3]
      %v1014 = vadd.f32 %v1013, %v892
      %1015 = vst [vmem:[#allocation3] sm:$0x3] %v1014
      %v1016 = vld [vmem:[#allocation4] sm:$0x3]
      %v1017 = vadd.f32 %v1016, %v996
      %1018 = vst [vmem:[#allocation4] sm:$0x3] %v1017
    $region45: #{tpu_custom_call.1} parent=1 // pred_fallthru
      _
    // Predicated region
    $region46: #{tpu_custom_call.1} parent=1 // pred_check
      %p1019 = pneg %p999
    $region47: #{tpu_custom_call.1} parent=1 // pred_check_branch
      %1021 = sbr.rel (%p1019) target = $region49
    $region48: #{tpu_custom_call.1} parent=1 // pred_region
      %v1022 = vld [vmem:[%s4] sm:$0x1]
      %v1023 = vlaneseq
      %v1024 = vand.u32 %v1023, 127
      %v1025 = vld [vmem:[#allocation2] sm:$0x3]
      %v1027 = vperm.slane %v1022, 0
      %v1029 = vadd.f32 %v1025, %v1027
      %vm1030 = vcmp.ge.s32.totalorder %v1024, 0
      %vm1031 = vcmp.lt.s32.totalorder %v1024, 16
      %vm1032 = vmand %vm1030, %vm1031
      %v1033 = vsel %vm1032, %v1029, -inf
      %vm1034 = vcmask 1041408
      %v1035 = vsel %vm1034, %v1033, -inf
      %1036 = vmax.xlane.f32.xlu0 %v1035
      %v1037 = vpop.xlane.xlu0 %1036
      %vm1038 = vcmp.eq.f32.partialorder %v1033, %v1037
      %vm1039 = vmand %vm1038, %vm1032
      %v1040 = vsel %vm1039, %v1024, 128
      %v1041 = vsel %vm1034, %v1040, 2147483647
      %v1042 = vand.u32 %v1041, 65535
      %v1043 = vshra.s32 %v1041, 16
      %v1044 = vcvt.s32.f32 %v1042
      %v1045 = vcvt.s32.f32 %v1043
      %1046 = vmin.xlane.f32.xlu0 %v1045
      %v1047 = vpop.xlane.xlu0 %1046
      %vm1048 = vcmp.eq.f32.partialorder %v1045, %v1047
      %v1049 = vsel %vm1048, %v1044, inf
      %1050 = vmin.xlane.f32.xlu0 %v1049
      %v1051 = vpop.xlane.xlu0 %1050
      %v1052 = vcvt.f32.s32 %v1051
      %v1053 = vcvt.f32.s32 %v1047
      %v1054 = vshll.u32 %v1053, 16
      %v1055 = vadd.s32 %v1054, %v1052
      %v1056 = vld [vmem:[#allocation3] sm:$0x3]
      %v1057 = vadd.f32 %v1056, %v1027
      %vm1058 = vcmp.ge.s32.totalorder %v1024, 16
      %vm1059 = vcmp.lt.s32.totalorder %v1024, 32
      %vm1060 = vmand %vm1058, %vm1059
      %v1061 = vsel %vm1060, %v1057, -inf
      %v1062 = vsel %vm1034, %v1061, -inf
      %1063 = vmax.xlane.f32.xlu0 %v1062
      %v1064 = vpop.xlane.xlu0 %1063
      %vm1065 = vcmp.eq.f32.partialorder %v1061, %v1064
      %vm1066 = vmand %vm1065, %vm1060
      %v1067 = vsel %vm1066, %v1024, 128
      %v1068 = vsel %vm1034, %v1067, 2147483647
      %v1069 = vand.u32 %v1068, 65535
      %v1070 = vshra.s32 %v1068, 16
      %v1071 = vcvt.s32.f32 %v1069
      %v1072 = vcvt.s32.f32 %v1070
      %1073 = vmin.xlane.f32.xlu0 %v1072
      %v1074 = vpop.xlane.xlu0 %1073
      %vm1075 = vcmp.eq.f32.partialorder %v1072, %v1074
      %v1076 = vsel %vm1075, %v1071, inf
      %1077 = vmin.xlane.f32.xlu0 %v1076
      %v1078 = vpop.xlane.xlu0 %1077
      %v1079 = vcvt.f32.s32 %v1078
      %v1080 = vcvt.f32.s32 %v1074
      %v1081 = vshll.u32 %v1080, 16
      %v1082 = vadd.s32 %v1081, %v1079
      %v1083 = vsub.s32 %v1082, 16
      %v1084 = vld [vmem:[#allocation4] sm:$0x3]
      %v1085 = vadd.f32 %v1084, %v1027
      %vm1086 = vcmp.ge.s32.totalorder %v1024, 32
      %vm1087 = vcmp.lt.s32.totalorder %v1024, 48
      %vm1088 = vmand %vm1086, %vm1087
      %v1089 = vsel %vm1088, %v1085, -inf
      %v1090 = vsel %vm1034, %v1089, -inf
      %1091 = vmax.xlane.f32.xlu0 %v1090
      %v1092 = vpop.xlane.xlu0 %1091
      %vm1093 = vcmp.eq.f32.partialorder %v1089, %v1092
      %vm1094 = vmand %vm1093, %vm1088
      %v1095 = vsel %vm1094, %v1024, 128
      %v1096 = vsel %vm1034, %v1095, 2147483647
      %v1097 = vand.u32 %v1096, 65535
      %v1098 = vshra.s32 %v1096, 16
      %v1099 = vcvt.s32.f32 %v1097
      %v1100 = vcvt.s32.f32 %v1098
      %1101 = vmin.xlane.f32.xlu0 %v1100
      %v1102 = vpop.xlane.xlu0 %1101
      %vm1103 = vcmp.eq.f32.partialorder %v1100, %v1102
      %v1104 = vsel %vm1103, %v1099, inf
      %1105 = vmin.xlane.f32.xlu0 %v1104
      %v1106 = vpop.xlane.xlu0 %1105
      %v1107 = vcvt.f32.s32 %v1106
      %v1108 = vcvt.f32.s32 %v1102
      %v1109 = vshll.u32 %v1108, 16
      %v1110 = vadd.s32 %v1109, %v1107
      %v1111 = vsub.s32 %v1110, 32
      %vm1112 = vcmp.lt.s32.totalorder %v1055, %v1083
      %v1113 = vsel %vm1112, %v1055, %v1083
      %vm1114 = vcmp.lt.s32.totalorder %v1113, %v1111
      %v1115 = vsel %vm1114, %v1113, %v1111
      %vm1116 = vcmp.eq.s32.totalorder %v1083, %v1111
      %vm1117 = vcmp.eq.s32.totalorder %v1055, %v1083
      %vm1118 = vcmp.eq.s32.totalorder %v1055, %v1111
      %vm1119 = vmor %vm1117, %vm1118
      %v1120 = vsel %vm1119, %v1055, %v1115
      %v1121 = vsel %vm1116, %v1083, %v1120
      %vm1122 = vcmask 1024
      %1123 = vst.msk [vmem:[%s5] sm:$0x3] %vm1122, %v1121
    $region49: #{tpu_custom_call.1} parent=1 // pred_fallthru
      _
    // Predicated region
    $region50: #{tpu_custom_call.1} parent=1 // pred_check
      _
    $region51: #{tpu_custom_call.1} parent=1 // pred_check_branch
      %1125 = sbr.rel (0) target = $region53
    $region52: #{tpu_custom_call.1} parent=1 // pred_region
      _
    $region53: #{tpu_custom_call.1} parent=1 // pred_fallthru
      _
    // Predicated region
    $region54: #{tpu_custom_call.1} parent=1 // pred_check
      _
    $region55: #{tpu_custom_call.1} parent=1 // pred_check_branch
      %1127 = sbr.rel (0) target = $region57
    $region56: #{tpu_custom_call.1} parent=1 // pred_region
      _
    $region57: #{tpu_custom_call.1} parent=1 // pred_fallthru
      _
    %1128 = vsyncpa [#allocation6], 1
    %1129 = vsyncpa [#allocation8], 1
    %1130 = vsyncpa [#allocation11], 1

</llo_original>
